<compile_context>
chip_gen: v6e
topology: v6e:2x2x1
jax: 0.10.0
libtpu: 0.0.40
codegen_flags: <defaults>
</compile_context>

<pallas_src>
import functools

import jax
import jax.numpy as jnp
from jax import lax
from jax.experimental import pallas as pl
from jax.experimental.pallas import tpu as pltpu

EPS = 1e-5  # nn.LayerNorm default


def _round_up(x, m):
    return ((x + m - 1) // m) * m


def prenorm_kernel(x_ref, params_ref, w_ref, o_ref):
    # x_ref:      (TM, D) row tile (last tile may be ragged; those rows' outputs
    #             are masked out by Pallas, and the op is strictly per-row).
    # params_ref: (3, D)  rows: [gamma, beta, linear_bias]
    # w_ref:      (D, D)  linear weight (resident across the grid)
    # o_ref:      (TM, D)
    x = x_ref[...].astype(jnp.float32)                       # (TM, D)

    # --- LayerNorm over the last axis (biased variance, like torch) ---
    mean = jnp.mean(x, axis=-1, keepdims=True)
    centered = x - mean
    var = jnp.mean(centered * centered, axis=-1, keepdims=True)
    x_norm = centered * lax.rsqrt(var + EPS)                  # (TM, D)

    p = params_ref[...].astype(jnp.float32)                   # (3, D)
    gamma = p[0:1, :]
    beta = p[1:2, :]
    bias = p[2:3, :]
    y = x_norm * gamma + beta

    # --- fn = Linear(D, D): f32 operands, f32 accumulation on the MXU ---
    out = jnp.dot(y, w_ref[...].astype(jnp.float32),
                  preferred_element_type=jnp.float32)
    out = out + bias
    o_ref[...] = out.astype(o_ref.dtype)


@functools.partial(jax.jit, static_argnames=("row_tile",))
def prenorm_linear(x, gamma, beta, w, b, *, row_tile=512):
    """x: (B, N, D); gamma/beta: (1, D); w: (D, D); b: (1, D)."""
    B, N, D = x.shape
    R = B * N

    # Flatten batch*tokens into the row axis (LayerNorm is strictly per-row).
    # Contiguous reshape -> metadata only, no extra HBM pass.
    x2 = x.reshape(R, D)

    # Fuse gamma / beta / linear-bias into one tiny (3, D) operand.
    params = jnp.concatenate(
        [gamma.reshape(1, D).astype(jnp.float32),
         beta.reshape(1, D).astype(jnp.float32),
         b.reshape(1, D).astype(jnp.float32)], axis=0)

    # Row tile: big (amortize pipeline overhead, feed the MXU), 8-row aligned.
    tm = min(row_tile, _round_up(R, 8))
    # Give v7x's two TensorCores at least 2 grid steps when R is big enough.
    if R >= 256 and pl.cdiv(R, tm) < 2:
        tm = _round_up(pl.cdiv(R, 2), 8)
    n_tiles = pl.cdiv(R, tm)

    # Explicit VMEM budget: double-buffered x/out tiles + resident W + params,
    # with headroom; clamped so it is valid on v5e/v6e (128 MiB) and v7x (64 MiB).
    bytes_x = 2 * tm * D * x2.dtype.itemsize
    bytes_o = 2 * tm * D * x.dtype.itemsize
    bytes_w = 2 * D * D * w.dtype.itemsize
    bytes_p = 2 * 3 * D * 4
    vmem_bytes = int(1.5 * (bytes_x + bytes_o + bytes_w + bytes_p)) + (4 << 20)
    vmem_bytes = min(max(vmem_bytes, 32 << 20), 64 << 20)

    out = pl.pallas_call(
        prenorm_kernel,
        out_shape=jax.ShapeDtypeStruct((R, D), x.dtype),
        grid_spec=pltpu.PrefetchScalarGridSpec(
            num_scalar_prefetch=0,
            grid=(n_tiles,),
            in_specs=[
                pl.BlockSpec((tm, D), lambda i: (i, 0)),   # x row tile (streamed)
                pl.BlockSpec((3, D), lambda i: (0, 0)),    # fused gamma/beta/bias
                pl.BlockSpec((D, D), lambda i: (0, 0)),    # W (stays resident)
            ],
            out_specs=pl.BlockSpec((tm, D), lambda i: (i, 0)),
        ),
        compiler_params=pltpu.CompilerParams(
            dimension_semantics=("parallel",),
            vmem_limit_bytes=vmem_bytes),
    )(x2, params, w)

    return out.reshape(B, N, D)


def prenorm_linear_ref(x, gamma, beta, w, b):
    xf = x.astype(jnp.float32)
    mean = jnp.mean(xf, axis=-1, keepdims=True)
    var = jnp.mean((xf - mean) ** 2, axis=-1, keepdims=True)
    y = (xf - mean) * lax.rsqrt(var + EPS) * gamma + beta
    return (y @ w + b).astype(x.dtype)


if __name__ == "__main__":
    B, N, D = 2, 16, 32  # small BolT-like shapes: batch, tokens, hidden dim

    key = jax.random.PRNGKey(0)
    kx, kw, kb, kbeta = jax.random.split(key, 4)

    x = jax.random.normal(kx, (B, N, D), dtype=jnp.float32)

    # LayerNorm: gamma=1, beta small random; Linear: random W, small random bias.
    gamma = jnp.ones((1, D), dtype=jnp.float32)
    beta = 0.1 * jax.random.normal(kbeta, (1, D), dtype=jnp.float32)
    w = jax.random.normal(kw, (D, D), dtype=jnp.float32) * (1.0 / jnp.sqrt(D))
    b = 0.1 * jax.random.normal(kb, (1, D), dtype=jnp.float32)

    out = prenorm_linear(x, gamma, beta, w, b)
    out = jax.block_until_ready(out)

    ref = prenorm_linear_ref(x, gamma, beta, w, b)
    # f32 operands give near-f32 parity; keep a modest tolerance in case the
    # default MXU precision rounds matmul operands to bf16 internally.
    assert jnp.allclose(out, ref, atol=2e-2, rtol=2e-2), "mismatch vs reference"

    print("KERNEL_OK")
</pallas_src>

<mosaic_0001>
module attributes {stable_mosaic.version = 11 : i64} {
  func.func @prenorm_kernel(%arg0: i32, %arg1: memref<32x32xf32, #tpu.memory_space<vmem>>, %arg2: memref<3x32xf32, #tpu.memory_space<vmem>>, %arg3: memref<32x32xf32, #tpu.memory_space<vmem>>, %arg4: memref<32x32xf32, #tpu.memory_space<vmem>>) attributes {dimension_semantics = [#tpu.dimension_semantics<parallel>], iteration_bounds = array<i64: 1>, scalar_prefetch = 0 : i64, scratch_operands = 0 : i64, tpu.core_type = #tpu.core_type<tc>, window_params = [{transform_indices = @transform_0, window_bounds = array<i64: 32, 32>}, {pipeline_mode = #tpu.pipeline_mode<synchronous>, transform_indices = @transform_1, window_bounds = array<i64: 3, 32>}, {pipeline_mode = #tpu.pipeline_mode<synchronous>, transform_indices = @transform_2, window_bounds = array<i64: 32, 32>}, {transform_indices = @transform_3, window_bounds = array<i64: 32, 32>}]} {
    %c0 = arith.constant 0 : index
    %c0_0 = arith.constant 0 : index
    %0 = vector.load %arg1[%c0, %c0_0] : memref<32x32xf32, #tpu.memory_space<vmem>>, vector<32x32xf32>
    %cst = arith.constant dense<0.000000e+00> : vector<32xf32>
    %1 = vector.multi_reduction <add>, %0, %cst [1] : vector<32x32xf32> to vector<32xf32>
    %2 = vector.shape_cast %1 : vector<32xf32> to vector<32x1xf32>
    %cst_1 = arith.constant 3.200000e+01 : f32
    %3 = vector.broadcast %cst_1 : f32 to vector<32x1xf32>
    %4 = arith.divf %2, %3 : vector<32x1xf32>
    %5 = vector.broadcast %4 : vector<32x1xf32> to vector<32x32xf32>
    %6 = arith.subf %0, %5 : vector<32x32xf32>
    %7 = arith.mulf %6, %6 : vector<32x32xf32>
    %cst_2 = arith.constant dense<0.000000e+00> : vector<32xf32>
    %8 = vector.multi_reduction <add>, %7, %cst_2 [1] : vector<32x32xf32> to vector<32xf32>
    %9 = vector.shape_cast %8 : vector<32xf32> to vector<32x1xf32>
    %cst_3 = arith.constant 3.200000e+01 : f32
    %10 = vector.broadcast %cst_3 : f32 to vector<32x1xf32>
    %11 = arith.divf %9, %10 : vector<32x1xf32>
    %cst_4 = arith.constant 9.99999974E-6 : f32
    %12 = vector.broadcast %cst_4 : f32 to vector<32x1xf32>
    %13 = arith.addf %11, %12 : vector<32x1xf32>
    %14 = math.rsqrt %13 : vector<32x1xf32>
    %15 = vector.broadcast %14 : vector<32x1xf32> to vector<32x32xf32>
    %16 = arith.mulf %6, %15 : vector<32x32xf32>
    %c0_5 = arith.constant 0 : index
    %c0_6 = arith.constant 0 : index
    %17 = vector.load %arg2[%c0_5, %c0_6] : memref<3x32xf32, #tpu.memory_space<vmem>>, vector<3x32xf32>
    %18 = vector.extract_strided_slice %17 {offsets = [0, 0], sizes = [1, 32], strides = [1, 1]} : vector<3x32xf32> to vector<1x32xf32>
    %19 = vector.extract_strided_slice %17 {offsets = [1, 0], sizes = [1, 32], strides = [1, 1]} : vector<3x32xf32> to vector<1x32xf32>
    %20 = vector.extract_strided_slice %17 {offsets = [2, 0], sizes = [1, 32], strides = [1, 1]} : vector<3x32xf32> to vector<1x32xf32>
    %21 = vector.broadcast %18 : vector<1x32xf32> to vector<32x32xf32>
    %22 = arith.mulf %16, %21 : vector<32x32xf32>
    %23 = vector.broadcast %19 : vector<1x32xf32> to vector<32x32xf32>
    %24 = arith.addf %22, %23 : vector<32x32xf32>
    %c0_7 = arith.constant 0 : index
    %c0_8 = arith.constant 0 : index
    %25 = vector.load %arg3[%c0_7, %c0_8] : memref<32x32xf32, #tpu.memory_space<vmem>>, vector<32x32xf32>
    %cst_9 = arith.constant dense<0.000000e+00> : vector<32x32xf32>
    %26 = tpu.matmul %24, %25, %cst_9 {dimension_numbers = #tpu.dot_dimension_numbers<[1], [0], [0], [1], [0, 0, 1, 1], [], []>} : vector<32x32xf32>, vector<32x32xf32>, vector<32x32xf32> -> vector<32x32xf32>
    %27 = vector.broadcast %20 : vector<1x32xf32> to vector<32x32xf32>
    %28 = arith.addf %26, %27 : vector<32x32xf32>
    %c0_10 = arith.constant 0 : index
    %c0_11 = arith.constant 0 : index
    %29 = vector.load %arg4[%c0_10, %c0_11] : memref<32x32xf32, #tpu.memory_space<vmem>>, vector<32x32xf32>
    tpu.vector_store %arg4[%c0_10, %c0_11], %28 {strides = array<i32>} : memref<32x32xf32, #tpu.memory_space<vmem>>, vector<32x32xf32>,
    return
  }
  func.func @transform_0(%arg0: i32) -> (i32, i32) {
    %c0_i32 = arith.constant 0 : i32
    %c0_i32_0 = arith.constant 0 : i32
    return %arg0, %c0_i32 : i32, i32
  }
  func.func @transform_1(%arg0: i32) -> (i32, i32) {
    %c0_i32 = arith.constant 0 : i32
    %c0_i32_0 = arith.constant 0 : i32
    %c0_i32_1 = arith.constant 0 : i32
    return %c0_i32, %c0_i32_0 : i32, i32
  }
  func.func @transform_2(%arg0: i32) -> (i32, i32) {
    %c0_i32 = arith.constant 0 : i32
    %c0_i32_0 = arith.constant 0 : i32
    %c0_i32_1 = arith.constant 0 : i32
    return %c0_i32, %c0_i32_0 : i32, i32
  }
  func.func @transform_3(%arg0: i32) -> (i32, i32) {
    %c0_i32 = arith.constant 0 : i32
    %c0_i32_0 = arith.constant 0 : i32
    return %arg0, %c0_i32 : i32, i32
  }
}

</mosaic_0001>

<llo_original>
// kernel: prenorm_linear.1
$region0: #{prenorm_linear.1}
  #allocation0 [shape = 'u32[]', space=smem, size = 0x4, offset = 0x4, fixed_abs, tag = 'smem constant byte address 0x4 - core index']
  #allocation1 [shape = 'u32[144,128]{1,0:T(1,128)}', space=vmem, size = 0x12000, scoped, tag = 'internal scratch']
  %s0 = inlined_call_operand.hbm [shape: f32[32,32], index: 0, kind: input, shape index: {}]
  %s1 = inlined_call_operand.vmem [shape: f32[3,32], index: 1, kind: input, shape index: {}]
  %s2 = inlined_call_operand.hbm [shape: f32[32,32], index: 2, kind: input, shape index: {}]
  %s3 = inlined_call_operand.hbm [shape: f32[32,32], index: 3, kind: output, shape index: {}]
  %s4 = sld [smem:[#allocation0]]
  $region30: #{prenorm_linear.1} parent=0
    _
  %s6 = ssub.s32 1, %s4
  %s7 = scalar_select 0, %s6, %s4
  $region1: #{prenorm_linear.1} parent=0
    #allocation2 [shape = 'u8[16384]{0}', space=vmem, size = 0x4000, scoped, tag = 'input window, operand 0, single buffered']
    #allocation3 [shape = 's32[1]{0}', space=sflag, size = 0x4, scoped, tag = 'scoped memory for prenorm_linear.1']
    #allocation4 [shape = 's32[1]{0}', space=sflag, size = 0x4, scoped, tag = 'scoped memory for prenorm_linear.1']
    #allocation5 [shape = 'u8[16384]{0}', space=vmem, size = 0x4000, scoped, tag = 'input window, operand 2, single buffered']
    #allocation6 [shape = 's32[1]{0}', space=sflag, size = 0x4, scoped, tag = 'scoped memory for prenorm_linear.1']
    #allocation7 [shape = 'u8[16384]{0}', space=vmem, size = 0x4000, scoped, tag = 'output window, operand 0, single buffered']
    %8 = vsyncpa [#allocation3], 0
    %9 = vsyncpa [#allocation6], 0
    %10 = vsyncpa [#allocation4], 0
    // Predicated region
    $region2: #{prenorm_linear.1} parent=1 // pred_check
      _
    $region3: #{prenorm_linear.1} parent=1 // pred_check_branch
      %12 = sbr.rel (0) target = $region5
    $region4: #{prenorm_linear.1} parent=1 // pred_region
      %s14 = ssub.s32 512, 512
      %15 = vsyncadd [#allocation3], %s14
      %s16 = sshll.u32 [#allocation2], 4
      %s17 = int_to_ptr.vmem [resolvable:$true] %s16
      %22 = dma.hbm_to_vmem [thread:$0]  %s0, 512, %s17, [#allocation3], 128, 128, 8
    $region5: #{prenorm_linear.1} parent=1 // pred_fallthru
      _
    // Predicated region
    $region6: #{prenorm_linear.1} parent=1 // pred_check
      _
    $region7: #{prenorm_linear.1} parent=1 // pred_check_branch
      %24 = sbr.rel (0) target = $region9
    $region8: #{prenorm_linear.1} parent=1 // pred_region
      _
    $region9: #{prenorm_linear.1} parent=1 // pred_fallthru
      _
    // Predicated region
    $region10: #{prenorm_linear.1} parent=1 // pred_check
      _
    $region11: #{prenorm_linear.1} parent=1 // pred_check_branch
      %26 = sbr.rel (0) target = $region13
    $region12: #{prenorm_linear.1} parent=1 // pred_region
      %s28 = ssub.s32 512, 512
      %29 = vsyncadd [#allocation6], %s28
      %s30 = sshll.u32 [#allocation5], 4
      %s31 = int_to_ptr.vmem [resolvable:$true] %s30
      %36 = dma.hbm_to_vmem [thread:$0]  %s2, 512, %s31, [#allocation6], 128, 128, 8
    $region13: #{prenorm_linear.1} parent=1 // pred_fallthru
      _
    // Predicated region
    $region14: #{prenorm_linear.1} parent=1 // pred_check
      _
    $region15: #{prenorm_linear.1} parent=1 // pred_check_branch
      %38 = sbr.rel (0) target = $region17
    $region16: #{prenorm_linear.1} parent=1 // pred_region
      %39 = dma.done [#allocation3], 512
    $region17: #{prenorm_linear.1} parent=1 // pred_fallthru
      _
    // Predicated region
    $region18: #{prenorm_linear.1} parent=1 // pred_check
      _
    $region19: #{prenorm_linear.1} parent=1 // pred_check_branch
      %41 = sbr.rel (0) target = $region21
    $region20: #{prenorm_linear.1} parent=1 // pred_region
      %42 = dma.done [#allocation6], 512
    $region21: #{prenorm_linear.1} parent=1 // pred_fallthru
      _
    %v43 = vld [vmem:[#allocation2] sm:$0xff]
    %v44 = vld [vmem:[#allocation2 + $0x8] sm:$0xff]
    %v45 = vld [vmem:[#allocation2 + $0x10] sm:$0xff]
    %v46 = vld [vmem:[#allocation2 + $0x18] sm:$0xff]
    %vm47 = vcmask 261120
    %v48 = vsel %vm47, %v43, 0.0
    %49 = vadd.xlane.f32.xlu0 %v48
    %v50 = vpop.xlane.xlu0 %49
    %v51 = vsel %vm47, %v44, 0.0
    %52 = vadd.xlane.f32.xlu0 %v51
    %v53 = vpop.xlane.xlu0 %52
    %v54 = vsel %vm47, %v45, 0.0
    %55 = vadd.xlane.f32.xlu0 %v54
    %v56 = vpop.xlane.xlu0 %55
    %v57 = vsel %vm47, %v46, 0.0
    %58 = vadd.xlane.f32.xlu0 %v57
    %v59 = vpop.xlane.xlu0 %58
    %v60 = vrcp.pop 32.0
    %v61 = vmul.f32 %v50, %v60
    %v62 = vmul.f32 %v53, %v60
    %v63 = vmul.f32 %v56, %v60
    %v64 = vmul.f32 %v59, %v60
    %v65 = vsub.f32 %v43, %v61
    %v66 = vsub.f32 %v44, %v62
    %v67 = vsub.f32 %v45, %v63
    %v68 = vsub.f32 %v46, %v64
    %v69 = vmul.f32 %v65, %v65
    %v70 = vmul.f32 %v66, %v66
    %v71 = vmul.f32 %v67, %v67
    %v72 = vmul.f32 %v68, %v68
    %v73 = vsel %vm47, %v69, 0.0
    %74 = vadd.xlane.f32.xlu0 %v73
    %v75 = vpop.xlane.xlu0 %74
    %v76 = vsel %vm47, %v70, 0.0
    %77 = vadd.xlane.f32.xlu0 %v76
    %v78 = vpop.xlane.xlu0 %77
    %v79 = vsel %vm47, %v71, 0.0
    %80 = vadd.xlane.f32.xlu0 %v79
    %v81 = vpop.xlane.xlu0 %80
    %v82 = vsel %vm47, %v72, 0.0
    %83 = vadd.xlane.f32.xlu0 %v82
    %v84 = vpop.xlane.xlu0 %83
    %v85 = vmul.f32 %v75, %v60
    %v86 = vmul.f32 %v78, %v60
    %v87 = vmul.f32 %v81, %v60
    %v88 = vmul.f32 %v84, %v60
    %v89 = vadd.f32 %v85, 1e-05
    %v90 = vadd.f32 %v86, 1e-05
    %v91 = vadd.f32 %v87, 1e-05
    %v92 = vadd.f32 %v88, 1e-05
    %v93 = vrsqrt.pop %v89
    %v94 = vrsqrt.pop %v90
    %v95 = vrsqrt.pop %v91
    %v96 = vrsqrt.pop %v92
    %v97 = vmul.f32 %v65, %v93
    %v98 = vmul.f32 %v66, %v94
    %v99 = vmul.f32 %v67, %v95
    %v100 = vmul.f32 %v68, %v96
    %v101 = vld [vmem:[%s1] sm:$0x7]
    %v102 = vlaneseq
    %v103 = vshrl.u32 %v102, 7
    %v104 = vsub.s32 0, %v103
    %v105 = vrot.slane %v101, %v104
    %v106 = vmul.f32 %v97, %v105
    %v107 = vmul.f32 %v98, %v105
    %v108 = vmul.f32 %v99, %v105
    %v109 = vmul.f32 %v100, %v105
    %v110 = vlaneseq
    %v111 = vshrl.u32 %v110, 7
    %v112 = vsub.s32 1, %v111
    %v113 = vrot.slane %v101, %v112
    %v114 = vadd.f32 %v106, %v113
    %v115 = vadd.f32 %v107, %v113
    %v116 = vadd.f32 %v108, %v113
    %v117 = vadd.f32 %v109, %v113
    %v118 = vld [vmem:[#allocation5] sm:$0xff]
    %v119 = vld [vmem:[#allocation5 + $0x8] sm:$0xff]
    %v120 = vld [vmem:[#allocation5 + $0x10] sm:$0xff]
    %v121 = vld [vmem:[#allocation5 + $0x18] sm:$0xff]
    %v122 = vlaneseq
    %v123 = vshrl.u32 %v122, 7
    %v124 = vsub.s32 2, %v123
    %v125 = vrot.slane %v101, %v124
    %v127 = vsel %vm47, %v114, 0
    %v130 = vsel %vm47, %v115, 0
    %v133 = vsel %vm47, %v116, 0
    %v136 = vsel %vm47, %v117, 0
    %138 = vmatprep.subr.mxu0 0.0
    %139 = vmatpush1.msra.mxu0 0.0
    %140 = vmatprep.subr.mxu0 0.0
    %141 = vmatpush1.msra.mxu0 0.0
    %142 = vmatprep.subr.mxu0 0.0
    %143 = vmatpush1.msra.mxu0 0.0
    %144 = vmatprep.subr.mxu0 0.0
    %145 = vmatpush1.msra.mxu0 0.0
    %146 = vmatprep.subr.mxu0 0.0
    %147 = vmatpush1.msra.mxu0 0.0
    %148 = vmatprep.subr.mxu0 0.0
    %149 = vmatpush1.msra.mxu0 0.0
    %150 = vmatprep.subr.mxu0 0.0
    %151 = vmatpush1.msra.mxu0 0.0
    %152 = vmatprep.subr.mxu0 0.0
    %153 = vmatpush1.msra.mxu0 0.0
    %154 = vmatprep.subr.mxu0 0.0
    %155 = vmatpush1.msra.mxu0 0.0
    %156 = vmatprep.subr.mxu0 0.0
    %157 = vmatpush1.msra.mxu0 0.0
    %158 = vmatprep.subr.mxu0 0.0
    %159 = vmatpush1.msra.mxu0 0.0
    %160 = vmatprep.subr.mxu0 0.0
    %161 = vmatpush1.msra.mxu0 0.0
    %162 = vmatprep.subr.mxu0 0.0
    %163 = vmatpush1.msra.mxu0 %v121
    %164 = vmatprep.subr.mxu0 0.0
    %165 = vmatpush1.msra.mxu0 %v120
    %166 = vmatprep.subr.mxu0 0.0
    %167 = vmatpush1.msra.mxu0 %v119
    %168 = vmatprep.subr.mxu0 0.0
    %169 = vmatpush1.msra.mxu0 %v118
    %170 = vmatprep.subr.mxu0 0.0
    %171 = vmatpush2.msra.mxu0 0.0
    %172 = vmatprep.subr.mxu0 0.0
    %173 = vmatpush2.msra.mxu0 0.0
    %174 = vmatprep.subr.mxu0 0.0
    %175 = vmatpush2.msra.mxu0 0.0
    %176 = vmatprep.subr.mxu0 0.0
    %177 = vmatpush2.msra.mxu0 0.0
    %178 = vmatprep.subr.mxu0 0.0
    %179 = vmatpush2.msra.mxu0 0.0
    %180 = vmatprep.subr.mxu0 0.0
    %181 = vmatpush2.msra.mxu0 0.0
    %182 = vmatprep.subr.mxu0 0.0
    %183 = vmatpush2.msra.mxu0 0.0
    %184 = vmatprep.subr.mxu0 0.0
    %185 = vmatpush2.msra.mxu0 0.0
    %186 = vmatprep.subr.mxu0 0.0
    %187 = vmatpush2.msra.mxu0 0.0
    %188 = vmatprep.subr.mxu0 0.0
    %189 = vmatpush2.msra.mxu0 0.0
    %190 = vmatprep.subr.mxu0 0.0
    %191 = vmatpush2.msra.mxu0 0.0
    %192 = vmatprep.subr.mxu0 0.0
    %193 = vmatpush2.msra.mxu0 0.0
    %194 = vmatprep.subr.mxu0 0.0
    %195 = vmatpush2.msra.mxu0 0.0
    %196 = vmatprep.subr.mxu0 0.0
    %197 = vmatpush2.msra.mxu0 0.0
    %198 = vmatprep.subr.mxu0 0.0
    %199 = vmatpush2.msra.mxu0 0.0
    %200 = vmatprep.subr.mxu0 0.0
    %201 = vmatpush2.msra.mxu0 0.0
    %202 = vmatprep.mubr.f32.mxu0 0.0
    %203 = vmatmul.mubr.f32.gmra.mxu0 %v127
    %v204 = vpop.f32.mrf.mxu0
    %v205 = vadd.f32 %v125, %v204
    %v206 = vpop.f32.mrf.mxu0
    %207 = vmatprep.mubr.f32.mxu0 0.0
    %208 = vmatmul.mubr.f32.gmra.mxu0 %v130
    %v209 = vpop.f32.mrf.mxu0
    %v210 = vadd.f32 %v125, %v209
    %v211 = vpop.f32.mrf.mxu0
    %212 = vmatprep.mubr.f32.mxu0 0.0
    %213 = vmatmul.mubr.f32.gmra.mxu0 %v133
    %v214 = vpop.f32.mrf.mxu0
    %v215 = vadd.f32 %v125, %v214
    %v216 = vpop.f32.mrf.mxu0
    %217 = vmatprep.mubr.f32.mxu0 0.0
    %218 = vmatmul.mubr.f32.gmra.mxu0 %v136
    %v219 = vpop.f32.mrf.mxu0
    %v220 = vadd.f32 %v125, %v219
    %v221 = vpop.f32.mrf.mxu0
    %222 = vdwg.mxu0
    %223 = vst.msk [vmem:[#allocation7] sm:$0xff] %vm47, %v205
    %224 = vst.msk [vmem:[#allocation7 + $0x8] sm:$0xff] %vm47, %v210
    %225 = vst.msk [vmem:[#allocation7 + $0x10] sm:$0xff] %vm47, %v215
    %226 = vst.msk [vmem:[#allocation7 + $0x18] sm:$0xff] %vm47, %v220
    // Predicated region
    $region22: #{prenorm_linear.1} parent=1 // pred_check
      _
    $region23: #{prenorm_linear.1} parent=1 // pred_check_branch
      %228 = sbr.rel (0) target = $region25
    $region24: #{prenorm_linear.1} parent=1 // pred_region
      %s230 = ssub.s32 512, 512
      %231 = vsyncadd [#allocation4], %s230
      %s232 = sshll.u32 [#allocation7], 4
      %s233 = int_to_ptr.vmem [resolvable:$true] %s232
      %238 = dma.vmem_to_hbm [thread:$0]  %s233, 512, %s3, [#allocation4], 128, 128, 8
    $region25: #{prenorm_linear.1} parent=1 // pred_fallthru
      _
    // Predicated region
    $region26: #{prenorm_linear.1} parent=1 // pred_check
      _
    $region27: #{prenorm_linear.1} parent=1 // pred_check_branch
      %240 = sbr.rel (0) target = $region29
    $region28: #{prenorm_linear.1} parent=1 // pred_region
      %241 = dma.done [#allocation4], 512
    $region29: #{prenorm_linear.1} parent=1 // pred_fallthru
      _
    %242 = vsyncpa [#allocation3], 1
    %243 = vsyncpa [#allocation6], 1
    %244 = vsyncpa [#allocation4], 1

</llo_original>
